<compile_context>
chip_gen: v7x
topology: tpu7x:2x2x1
jax: 0.10.0
libtpu: 0.0.40
codegen_flags: <defaults>
</compile_context>

<pallas_src>
import jax
import jax.numpy as jnp
from jax.experimental import pallas as pl
from jax.experimental.pallas import tpu as pltpu

EPS = 1e-6


def _round_up(v, m):
    return ((v + m - 1) // m) * m


def _layer_norm_f32(x, g, b):
    """x: (TM, D) f32. Single-sweep mean/var (unbiased, matching torch.std default).

    Matches the PyTorch module: (x - mean) / (std + eps) * g + b.
    """
    d = x.shape[-1]
    s = jnp.sum(x, axis=-1, keepdims=True)
    ss = jnp.sum(x * x, axis=-1, keepdims=True)
    mean = s * (1.0 / d)
    var = (ss - s * mean) * (1.0 / (d - 1))          # unbiased (N-1)
    std = jnp.sqrt(jnp.maximum(var, 0.0))
    inv = pl.reciprocal(std + EPS, approx=True)      # EUP slot; fall back to approx=False if tighter accuracy needed
    return (x - mean) * (inv * g) + b


def _slc_kernel_resident(x_ref, g_ref, b_ref, w_ref, bw_ref, o_ref):
    """Whole (D, D) bf16 weight resident in VMEM; grid is 1-D over row tiles."""
    x = x_ref[...].astype(jnp.float32)
    normed = _layer_norm_f32(x, g_ref[...], b_ref[...]).astype(jnp.bfloat16)
    y = jnp.dot(normed, w_ref[...], preferred_element_type=jnp.float32) + bw_ref[...]
    o_ref[...] = (x + y).astype(o_ref.dtype)


def _slc_kernel_ntiled(x_ref, xc_ref, g_ref, b_ref, w_ref, bw_ref, o_ref, normed_ref):
    """Output columns (Linear N dim) tiled; LayerNorm computed once per row tile at j == 0
    and stashed (bf16) in VMEM scratch, reused for every weight column tile."""
    j = pl.program_id(1)

    @pl.when(j == 0)
    def _():
        x = x_ref[...].astype(jnp.float32)
        normed_ref[...] = _layer_norm_f32(x, g_ref[...], b_ref[...]).astype(jnp.bfloat16)

    y = jnp.dot(normed_ref[...], w_ref[...], preferred_element_type=jnp.float32) + bw_ref[...]
    o_ref[...] = (xc_ref[...].astype(jnp.float32) + y).astype(o_ref.dtype)


def sublayer_connection(x, ln_w, ln_b, lin_w, lin_b, *,
                        tile_rows=256, tile_cols=512,
                        weight_resident_bytes=8 * 1024 * 1024):
    """SublayerConnection forward: x + Linear(LayerNorm(x))  (dropout = identity / eval mode).

    x: (B, S, D); ln_w / ln_b: (D,); lin_w: (D, D) torch layout (out, in); lin_b: (D,).
    """
    B, S, D = x.shape
    assert D % 128 == 0, "feature dim must be a multiple of 128 (lane-dense); pad features upstream"
    M = B * S

    # Row tiling: big tiles amortize per-grid-step overhead and fill the MXU; pad M to the tile.
    tm = min(tile_rows, _round_up(M, 8))
    Mp = _round_up(M, tm)
    x2 = x.reshape(M, D)
    if Mp != M:
        x2 = jnp.pad(x2, ((0, Mp - M), (0, 0)))

    g2 = ln_w.reshape(1, D).astype(jnp.float32)
    b2 = ln_b.reshape(1, D).astype(jnp.float32)
    wT = lin_w.T.astype(jnp.bfloat16)            # (in, out) bf16 MXU operand
    bw2 = lin_b.reshape(1, D).astype(jnp.float32)

    # Keep the full bf16 weight resident when small (fetched once -> x/out traffic only);
    # otherwise tile the output/N dim so the weight working set fits v7x's 64 MiB VMEM.
    weight_bytes = D * D * 2
    if weight_bytes <= weight_resident_bytes:
        tn = D
    else:
        tn = min(tile_cols, D)
        assert tn % 128 == 0 and D % tn == 0, "tile_cols must divide D and be a multiple of 128"

    compiler_params = pltpu.CompilerParams(
        dimension_semantics=("parallel",) if tn == D else ("parallel", "arbitrary"),
        vmem_limit_bytes=48 * 1024 * 1024,
    )

    if tn == D:
        out = pl.pallas_call(
            _slc_kernel_resident,
            out_shape=jax.ShapeDtypeStruct((Mp, D), x.dtype),
            grid=(Mp // tm,),
            in_specs=[
                pl.BlockSpec((tm, D), lambda i: (i, 0)),   # x row tile
                pl.BlockSpec((1, D), lambda i: (0, 0)),    # LN gain
                pl.BlockSpec((1, D), lambda i: (0, 0)),    # LN bias
                pl.BlockSpec((D, D), lambda i: (0, 0)),    # bf16 weight, constant index -> fetched once
                pl.BlockSpec((1, D), lambda i: (0, 0)),    # linear bias
            ],
            out_specs=pl.BlockSpec((tm, D), lambda i: (i, 0)),
            compiler_params=compiler_params,
        )(x2, g2, b2, wT, bw2)
    else:
        out = pl.pallas_call(
            _slc_kernel_ntiled,
            out_shape=jax.ShapeDtypeStruct((Mp, D), x.dtype),
            grid=(Mp // tm, D // tn),
            in_specs=[
                pl.BlockSpec((tm, D), lambda i, j: (i, 0)),    # x rows (full width for LN; constant over j)
                pl.BlockSpec((tm, tn), lambda i, j: (i, j)),   # x column tile for the residual add
                pl.BlockSpec((1, D), lambda i, j: (0, 0)),     # LN gain
                pl.BlockSpec((1, D), lambda i, j: (0, 0)),     # LN bias
                pl.BlockSpec((D, tn), lambda i, j: (0, j)),    # bf16 weight column tile
                pl.BlockSpec((1, tn), lambda i, j: (0, j)),    # linear bias column tile
            ],
            out_specs=pl.BlockSpec((tm, tn), lambda i, j: (i, j)),
            scratch_shapes=[pltpu.VMEM((tm, D), jnp.bfloat16)],  # normalized rows, reused across j
            compiler_params=compiler_params,
        )(x2, x2, g2, b2, wT, bw2)

    if Mp != M:
        out = out[:M]
    return out.reshape(B, S, D)


def _reference(x, ln_w, ln_b, lin_w, lin_b):
    """Pure-f32 reference matching the PyTorch module semantics."""
    mean = jnp.mean(x, axis=-1, keepdims=True)
    diff = x - mean
    var = jnp.sum(diff * diff, axis=-1, keepdims=True) / (x.shape[-1] - 1)
    std = jnp.sqrt(var)
    normed = ln_w * (diff / (std + EPS)) + ln_b
    y = normed @ lin_w.T + lin_b
    return x + y


if __name__ == "__main__":
    key = jax.random.PRNGKey(0)
    B, S, D = 2, 8, 256   # D must be a multiple of 128 (lane-dense feature dim)

    k_x, k_w, k_b = jax.random.split(key, 3)
    x = jax.random.normal(k_x, (B, S, D), dtype=jnp.float32)

    # LayerNorm params as in __init__: ones / zeros
    ln_w = jnp.ones((D,), dtype=jnp.float32)
    ln_b = jnp.zeros((D,), dtype=jnp.float32)

    # Deterministic "sublayer" = Linear(D, D), torch weight layout (out, in)
    lin_w = jax.random.normal(k_w, (D, D), dtype=jnp.float32) * 0.05
    lin_b = jax.random.normal(k_b, (D,), dtype=jnp.float32) * 0.05

    ref = _reference(x, ln_w, ln_b, lin_w, lin_b)

    # Path 1: weight fully resident (default; v5e/v6e-style).
    out_resident = jax.block_until_ready(sublayer_connection(x, ln_w, ln_b, lin_w, lin_b))

    # Path 2: N-tiled weight (forced here; the layout used for large D / v7x VMEM limits).
    out_ntiled = jax.block_until_ready(
        sublayer_connection(x, ln_w, ln_b, lin_w, lin_b,
                            tile_cols=128, weight_resident_bytes=0))

    # bf16 MXU operands -> loosen tolerance vs. the f32 reference.
    assert out_resident.shape == (B, S, D)
    assert out_ntiled.shape == (B, S, D)
    assert jnp.allclose(out_resident, ref, atol=3e-2, rtol=3e-2), "resident path mismatch vs reference"
    assert jnp.allclose(out_ntiled, ref, atol=3e-2, rtol=3e-2), "n-tiled path mismatch vs reference"

    print("KERNEL_OK")
</pallas_src>

<mosaic_0001>
module attributes {stable_mosaic.version = 11 : i64} {
  func.func @_slc_kernel_resident(%arg0: i32, %arg1: memref<16x256xf32, #tpu.memory_space<vmem>>, %arg2: memref<1x256xf32, #tpu.memory_space<vmem>>, %arg3: memref<1x256xf32, #tpu.memory_space<vmem>>, %arg4: memref<256x256xbf16, #tpu.memory_space<vmem>>, %arg5: memref<1x256xf32, #tpu.memory_space<vmem>>, %arg6: memref<16x256xf32, #tpu.memory_space<vmem>>) attributes {dimension_semantics = [#tpu.dimension_semantics<parallel>], iteration_bounds = array<i64: 1>, scalar_prefetch = 0 : i64, scratch_operands = 0 : i64, tpu.core_type = #tpu.core_type<tc>, window_params = [{transform_indices = @transform_0, window_bounds = array<i64: 16, 256>}, {pipeline_mode = #tpu.pipeline_mode<synchronous>, transform_indices = @transform_1, window_bounds = array<i64: 1, 256>}, {pipeline_mode = #tpu.pipeline_mode<synchronous>, transform_indices = @transform_2, window_bounds = array<i64: 1, 256>}, {pipeline_mode = #tpu.pipeline_mode<synchronous>, transform_indices = @transform_3, window_bounds = array<i64: 256, 256>}, {pipeline_mode = #tpu.pipeline_mode<synchronous>, transform_indices = @transform_4, window_bounds = array<i64: 1, 256>}, {transform_indices = @transform_5, window_bounds = array<i64: 16, 256>}]} {
    %c0 = arith.constant 0 : index
    %c0_0 = arith.constant 0 : index
    %0 = vector.load %arg1[%c0, %c0_0] : memref<16x256xf32, #tpu.memory_space<vmem>>, vector<16x256xf32>
    %c0_1 = arith.constant 0 : index
    %c0_2 = arith.constant 0 : index
    %1 = vector.load %arg2[%c0_1, %c0_2] : memref<1x256xf32, #tpu.memory_space<vmem>>, vector<1x256xf32>
    %c0_3 = arith.constant 0 : index
    %c0_4 = arith.constant 0 : index
    %2 = vector.load %arg3[%c0_3, %c0_4] : memref<1x256xf32, #tpu.memory_space<vmem>>, vector<1x256xf32>
    %cst = arith.constant dense<0.000000e+00> : vector<16xf32>
    %3 = vector.multi_reduction <add>, %0, %cst [1] : vector<16x256xf32> to vector<16xf32>
    %4 = vector.shape_cast %3 : vector<16xf32> to vector<16x1xf32>
    %5 = arith.mulf %0, %0 : vector<16x256xf32>
    %cst_5 = arith.constant dense<0.000000e+00> : vector<16xf32>
    %6 = vector.multi_reduction <add>, %5, %cst_5 [1] : vector<16x256xf32> to vector<16xf32>
    %7 = vector.shape_cast %6 : vector<16xf32> to vector<16x1xf32>
    %cst_6 = arith.constant 3.906250e-03 : f32
    %8 = vector.broadcast %cst_6 : f32 to vector<16x1xf32>
    %9 = arith.mulf %4, %8 : vector<16x1xf32>
    %10 = arith.mulf %4, %9 : vector<16x1xf32>
    %11 = arith.subf %7, %10 : vector<16x1xf32>
    %cst_7 = arith.constant 0.00392156886 : f32
    %12 = vector.broadcast %cst_7 : f32 to vector<16x1xf32>
    %13 = arith.mulf %11, %12 : vector<16x1xf32>
    %cst_8 = arith.constant 0.000000e+00 : f32
    %14 = vector.broadcast %cst_8 : f32 to vector<16x1xf32>
    %15 = arith.maximumf %13, %14 : vector<16x1xf32>
    %16 = math.sqrt %15 : vector<16x1xf32>
    %cst_9 = arith.constant 9.99999997E-7 : f32
    %17 = vector.broadcast %cst_9 : f32 to vector<16x1xf32>
    %18 = arith.addf %16, %17 : vector<16x1xf32>
    %19 = tpu.reciprocal %18 {approx = true} : vector<16x1xf32> -> vector<16x1xf32>
    %20 = vector.broadcast %9 : vector<16x1xf32> to vector<16x256xf32>
    %21 = arith.subf %0, %20 : vector<16x256xf32>
    %22 = vector.broadcast %19 : vector<16x1xf32> to vector<16x256xf32>
    %23 = vector.broadcast %1 : vector<1x256xf32> to vector<16x256xf32>
    %24 = arith.mulf %22, %23 : vector<16x256xf32>
    %25 = arith.mulf %21, %24 : vector<16x256xf32>
    %26 = vector.broadcast %2 : vector<1x256xf32> to vector<16x256xf32>
    %27 = arith.addf %25, %26 : vector<16x256xf32>
    %28 = arith.truncf %27 : vector<16x256xf32> to vector<16x256xbf16>
    %c0_10 = arith.constant 0 : index
    %c0_11 = arith.constant 0 : index
    %29 = vector.load %arg4[%c0_10, %c0_11] : memref<256x256xbf16, #tpu.memory_space<vmem>>, vector<256x256xbf16>
    %cst_12 = arith.constant dense<0.000000e+00> : vector<16x256xf32>
    %30 = tpu.matmul %28, %29, %cst_12 {dimension_numbers = #tpu.dot_dimension_numbers<[1], [0], [0], [1], [0, 0, 1, 1], [], []>} : vector<16x256xbf16>, vector<256x256xbf16>, vector<16x256xf32> -> vector<16x256xf32>
    %c0_13 = arith.constant 0 : index
    %c0_14 = arith.constant 0 : index
    %31 = vector.load %arg5[%c0_13, %c0_14] : memref<1x256xf32, #tpu.memory_space<vmem>>, vector<1x256xf32>
    %32 = vector.broadcast %31 : vector<1x256xf32> to vector<16x256xf32>
    %33 = arith.addf %30, %32 : vector<16x256xf32>
    %34 = arith.addf %0, %33 : vector<16x256xf32>
    %c0_15 = arith.constant 0 : index
    %c0_16 = arith.constant 0 : index
    %35 = vector.load %arg6[%c0_15, %c0_16] : memref<16x256xf32, #tpu.memory_space<vmem>>, vector<16x256xf32>
    tpu.vector_store %arg6[%c0_15, %c0_16], %34 {strides = array<i32>} : memref<16x256xf32, #tpu.memory_space<vmem>>, vector<16x256xf32>,
    return
  }
  func.func @transform_0(%arg0: i32) -> (i32, i32) {
    %c0_i32 = arith.constant 0 : i32
    %c0_i32_0 = arith.constant 0 : i32
    return %arg0, %c0_i32 : i32, i32
  }
  func.func @transform_1(%arg0: i32) -> (i32, i32) {
    %c0_i32 = arith.constant 0 : i32
    %c0_i32_0 = arith.constant 0 : i32
    %c0_i32_1 = arith.constant 0 : i32
    return %c0_i32, %c0_i32_0 : i32, i32
  }
  func.func @transform_2(%arg0: i32) -> (i32, i32) {
    %c0_i32 = arith.constant 0 : i32
    %c0_i32_0 = arith.constant 0 : i32
    %c0_i32_1 = arith.constant 0 : i32
    return %c0_i32, %c0_i32_0 : i32, i32
  }
  func.func @transform_3(%arg0: i32) -> (i32, i32) {
    %c0_i32 = arith.constant 0 : i32
    %c0_i32_0 = arith.constant 0 : i32
    %c0_i32_1 = arith.constant 0 : i32
    return %c0_i32, %c0_i32_0 : i32, i32
  }
  func.func @transform_4(%arg0: i32) -> (i32, i32) {
    %c0_i32 = arith.constant 0 : i32
    %c0_i32_0 = arith.constant 0 : i32
    %c0_i32_1 = arith.constant 0 : i32
    return %c0_i32, %c0_i32_0 : i32, i32
  }
  func.func @transform_5(%arg0: i32) -> (i32, i32) {
    %c0_i32 = arith.constant 0 : i32
    %c0_i32_0 = arith.constant 0 : i32
    return %arg0, %c0_i32 : i32, i32
  }
}

</mosaic_0001>

<llo_original>
// kernel: tpu_custom_call.1
$region0: #{tpu_custom_call.1}
  #allocation0 [shape = 'u32[]', space=smem, size = 0x4, offset = 0x4, fixed_abs, tag = 'smem constant byte address 0x4 - core index']
  #allocation1 [shape = 'u32[144,128]{1,0:T(1,128)}', space=vmem, size = 0x12000, scoped, tag = 'internal scratch']
  %s0 = inlined_call_operand.hbm [shape: f32[16,256], index: 0, kind: input, shape index: {}]
  %s1 = inlined_call_operand.vmem [shape: f32[1,256], index: 1, kind: input, shape index: {}]
  %s2 = inlined_call_operand.vmem [shape: f32[1,256], index: 2, kind: input, shape index: {}]
  %s3 = inlined_call_operand.hbm [shape: bf16[256,256], index: 3, kind: input, shape index: {}]
  %s4 = inlined_call_operand.vmem [shape: f32[1,256], index: 4, kind: input, shape index: {}]
  %s5 = inlined_call_operand.hbm [shape: f32[16,256], index: 5, kind: output, shape index: {}]
  %s6 = sld [smem:[#allocation0]]
  $region38: #{tpu_custom_call.1} parent=0
    _
  %s8 = ssub.s32 1, %s6
  %s9 = scalar_select 0, %s8, %s6
  $region1: #{tpu_custom_call.1} parent=0
    #allocation2 [shape = 'u8[16384]{0}', space=vmem, size = 0x4000, scoped, tag = 'input window, operand 0, single buffered']
    #allocation3 [shape = 's32[1]{0}', space=sflag, size = 0x4, scoped, tag = 'scoped memory for tpu_custom_call.1']
    #allocation4 [shape = 's32[1]{0}', space=sflag, size = 0x4, scoped, tag = 'scoped memory for tpu_custom_call.1']
    #allocation5 [shape = 'u8[131072]{0}', space=vmem, size = 0x20000, scoped, tag = 'input window, operand 3, single buffered']
    #allocation6 [shape = 's32[1]{0}', space=sflag, size = 0x4, scoped, tag = 'scoped memory for tpu_custom_call.1']
    #allocation7 [shape = 'u8[16384]{0}', space=vmem, size = 0x4000, scoped, tag = 'output window, operand 0, single buffered']
    %10 = vsyncpa [#allocation3], 0
    %11 = vsyncpa [#allocation6], 0
    %12 = vsyncpa [#allocation4], 0
    // Predicated region
    $region2: #{tpu_custom_call.1} parent=1 // pred_check
      _
    $region3: #{tpu_custom_call.1} parent=1 // pred_check_branch
      %14 = sbr.rel (0) target = $region5
    $region4: #{tpu_custom_call.1} parent=1 // pred_region
      %s16 = ssub.s32 512, 512
      %17 = vsyncadd [#allocation3], %s16
      %s18 = sshll.u32 [#allocation2], 4
      %s19 = int_to_ptr.vmem [resolvable:$true] %s18
      %24 = dma.hbm_to_vmem [thread:$0]  %s0, 512, %s19, [#allocation3], 256, 256, 16
    $region5: #{tpu_custom_call.1} parent=1 // pred_fallthru
      _
    // Predicated region
    $region6: #{tpu_custom_call.1} parent=1 // pred_check
      _
    $region7: #{tpu_custom_call.1} parent=1 // pred_check_branch
      %26 = sbr.rel (0) target = $region9
    $region8: #{tpu_custom_call.1} parent=1 // pred_region
      _
    $region9: #{tpu_custom_call.1} parent=1 // pred_fallthru
      _
    // Predicated region
    $region10: #{tpu_custom_call.1} parent=1 // pred_check
      _
    $region11: #{tpu_custom_call.1} parent=1 // pred_check_branch
      %28 = sbr.rel (0) target = $region13
    $region12: #{tpu_custom_call.1} parent=1 // pred_region
      _
    $region13: #{tpu_custom_call.1} parent=1 // pred_fallthru
      _
    // Predicated region
    $region14: #{tpu_custom_call.1} parent=1 // pred_check
      _
    $region15: #{tpu_custom_call.1} parent=1 // pred_check_branch
      %30 = sbr.rel (0) target = $region17
    $region16: #{tpu_custom_call.1} parent=1 // pred_region
      %s32 = ssub.s32 4096, 4096
      %33 = vsyncadd [#allocation6], %s32
      %s34 = sshll.u32 [#allocation5], 4
      %s35 = int_to_ptr.vmem [resolvable:$true] %s34
      %40 = dma.hbm_to_vmem [thread:$0]  %s3, 4096, %s35, [#allocation6], 128, 128, 8
    $region17: #{tpu_custom_call.1} parent=1 // pred_fallthru
      _
    // Predicated region
    $region18: #{tpu_custom_call.1} parent=1 // pred_check
      _
    $region19: #{tpu_custom_call.1} parent=1 // pred_check_branch
      %42 = sbr.rel (0) target = $region21
    $region20: #{tpu_custom_call.1} parent=1 // pred_region
      _
    $region21: #{tpu_custom_call.1} parent=1 // pred_fallthru
      _
    // Predicated region
    $region22: #{tpu_custom_call.1} parent=1 // pred_check
      _
    $region23: #{tpu_custom_call.1} parent=1 // pred_check_branch
      %44 = sbr.rel (0) target = $region25
    $region24: #{tpu_custom_call.1} parent=1 // pred_region
      %45 = dma.done [#allocation3], 512
    $region25: #{tpu_custom_call.1} parent=1 // pred_fallthru
      _
    // Predicated region
    $region26: #{tpu_custom_call.1} parent=1 // pred_check
      _
    $region27: #{tpu_custom_call.1} parent=1 // pred_check_branch
      %47 = sbr.rel (0) target = $region29
    $region28: #{tpu_custom_call.1} parent=1 // pred_region
      %48 = dma.done [#allocation6], 4096
    $region29: #{tpu_custom_call.1} parent=1 // pred_fallthru
      _
    %v49 = vld [vmem:[#allocation2] sm:$0xff]
    %v50 = vld [vmem:[#allocation2 + $0x8] sm:$0xff]
    %v51 = vld [vmem:[#allocation2 + $0x10] sm:$0xff]
    %v52 = vld [vmem:[#allocation2 + $0x18] sm:$0xff]
    %v53 = vld [vmem:[%s1] sm:$0x3]
    %v54 = vld [vmem:[%s2] sm:$0x3]
    %v55 = vadd.f32 %v49, %v50
    %56 = vadd.xlane.f32.xlu0 %v55
    %v57 = vpop.xlane.xlu0 %56
    %v58 = vadd.f32 %v51, %v52
    %59 = vadd.xlane.f32.xlu0 %v58
    %v60 = vpop.xlane.xlu0 %59
    %v61 = vmul.f32 %v49, %v49
    %v62 = vmul.f32 %v50, %v50
    %v63 = vmul.f32 %v51, %v51
    %v64 = vmul.f32 %v52, %v52
    %v65 = vadd.f32 %v61, %v62
    %66 = vadd.xlane.f32.xlu0 %v65
    %v67 = vpop.xlane.xlu0 %66
    %v68 = vadd.f32 %v63, %v64
    %69 = vadd.xlane.f32.xlu0 %v68
    %v70 = vpop.xlane.xlu0 %69
    %v71 = vmul.f32 %v57, 0.00390625
    %v72 = vmul.f32 %v60, 0.00390625
    %v73 = vmul.f32 %v57, %v71
    %v74 = vmul.f32 %v60, %v72
    %v75 = vsub.f32 %v67, %v73
    %v76 = vsub.f32 %v70, %v74
    %v77 = vmul.f32 %v75, 0.003921569
    %v78 = vmul.f32 %v76, 0.003921569
    %v79 = vmax.f32 %v77, 0.0
    %v80 = vmax.f32 %v78, 0.0
    %v81 = vrsqrt.pop %v79
    %v82 = vmul.f32 %v79, %v81
    %vm83 = vcmp.eq.f32.partialorder %v79, inf
    %v84 = vsel %vm83, %v79, %v82
    %vm85 = vcmp.eq.f32.partialorder %v79, 0.0
    %v86 = vand.u32 %v79, 2147483648
    %v87 = vsel %vm85, %v86, %v84
    %v88 = vrsqrt.pop %v80
    %v89 = vmul.f32 %v80, %v88
    %vm90 = vcmp.eq.f32.partialorder %v80, inf
    %v91 = vsel %vm90, %v80, %v89
    %vm92 = vcmp.eq.f32.partialorder %v80, 0.0
    %v93 = vand.u32 %v80, 2147483648
    %v94 = vsel %vm92, %v93, %v91
    %v95 = vadd.f32 %v87, 1e-06
    %v96 = vadd.f32 %v94, 1e-06
    %v97 = vrcp.pop %v95
    %v98 = vrcp.pop %v96
    %v99 = vsub.f32 %v49, %v71
    %v100 = vsub.f32 %v50, %v71
    %v101 = vsub.f32 %v51, %v72
    %v102 = vsub.f32 %v52, %v72
    %v104 = vlaneseq
    %v105 = vshrl.u32 %v104, 7
    %v106 = vsub.s32 0, %v105
    %v107 = vrot.slane %v53, %v106
    %v108 = vlaneseq
    %v109 = vshrl.u32 %v108, 7
    %v110 = vsub.s32 1, %v109
    %v111 = vrot.slane %v53, %v110
    %v114 = vmul.f32 %v97, %v107
    %v115 = vmul.f32 %v97, %v111
    %v116 = vmul.f32 %v98, %v107
    %v117 = vmul.f32 %v98, %v111
    %v118 = vmul.f32 %v99, %v114
    %v119 = vmul.f32 %v100, %v115
    %v120 = vmul.f32 %v101, %v116
    %v121 = vmul.f32 %v102, %v117
    %v123 = vlaneseq
    %v124 = vshrl.u32 %v123, 7
    %v125 = vsub.s32 0, %v124
    %v126 = vrot.slane %v54, %v125
    %v127 = vlaneseq
    %v128 = vshrl.u32 %v127, 7
    %v129 = vsub.s32 1, %v128
    %v130 = vrot.slane %v54, %v129
    %v133 = vadd.f32 %v118, %v126
    %v134 = vadd.f32 %v119, %v130
    %v135 = vadd.f32 %v120, %v126
    %v136 = vadd.f32 %v121, %v130
    %v137 = vpack.c.bf16 %v135, %v133
    %v138 = vpack.c.bf16 %v136, %v134
    %v139 = vld [vmem:[#allocation5] sm:$0xff]
    %v140 = vld [vmem:[#allocation5 + $0x8] sm:$0xff]
    %v141 = vld [vmem:[#allocation5 + $0x10] sm:$0xff]
    %v142 = vld [vmem:[#allocation5 + $0x18] sm:$0xff]
    %v143 = vld [vmem:[#allocation5 + $0x20] sm:$0xff]
    %v144 = vld [vmem:[#allocation5 + $0x28] sm:$0xff]
    %v145 = vld [vmem:[#allocation5 + $0x30] sm:$0xff]
    %v146 = vld [vmem:[#allocation5 + $0x38] sm:$0xff]
    %v147 = vld [vmem:[#allocation5 + $0x40] sm:$0xff]
    %v148 = vld [vmem:[#allocation5 + $0x48] sm:$0xff]
    %v149 = vld [vmem:[#allocation5 + $0x50] sm:$0xff]
    %v150 = vld [vmem:[#allocation5 + $0x58] sm:$0xff]
    %v151 = vld [vmem:[#allocation5 + $0x60] sm:$0xff]
    %v152 = vld [vmem:[#allocation5 + $0x68] sm:$0xff]
    %v153 = vld [vmem:[#allocation5 + $0x70] sm:$0xff]
    %v154 = vld [vmem:[#allocation5 + $0x78] sm:$0xff]
    %v155 = vld [vmem:[#allocation5 + $0x80] sm:$0xff]
    %v156 = vld [vmem:[#allocation5 + $0x88] sm:$0xff]
    %v157 = vld [vmem:[#allocation5 + $0x90] sm:$0xff]
    %v158 = vld [vmem:[#allocation5 + $0x98] sm:$0xff]
    %v159 = vld [vmem:[#allocation5 + $0xa0] sm:$0xff]
    %v160 = vld [vmem:[#allocation5 + $0xa8] sm:$0xff]
    %v161 = vld [vmem:[#allocation5 + $0xb0] sm:$0xff]
    %v162 = vld [vmem:[#allocation5 + $0xb8] sm:$0xff]
    %v163 = vld [vmem:[#allocation5 + $0xc0] sm:$0xff]
    %v164 = vld [vmem:[#allocation5 + $0xc8] sm:$0xff]
    %v165 = vld [vmem:[#allocation5 + $0xd0] sm:$0xff]
    %v166 = vld [vmem:[#allocation5 + $0xd8] sm:$0xff]
    %v167 = vld [vmem:[#allocation5 + $0xe0] sm:$0xff]
    %v168 = vld [vmem:[#allocation5 + $0xe8] sm:$0xff]
    %v169 = vld [vmem:[#allocation5 + $0xf0] sm:$0xff]
    %v170 = vld [vmem:[#allocation5 + $0xf8] sm:$0xff]
    %v171 = vld [vmem:[%s4] sm:$0x3]
    %v173 = vlaneseq
    %v174 = vshrl.u32 %v173, 7
    %v175 = vsub.s32 0, %v174
    %v176 = vrot.slane %v171, %v175
    %v177 = vlaneseq
    %v178 = vshrl.u32 %v177, 7
    %v179 = vsub.s32 1, %v178
    %v180 = vrot.slane %v171, %v179
    %v215 = vunpack.c.l.b16 %v139
    %v216 = vunpack.c.h.b16 %v139
    %v217 = vunpack.c.l.b16 %v140
    %v218 = vunpack.c.h.b16 %v140
    %v219 = vunpack.c.l.b16 %v141
    %v220 = vunpack.c.h.b16 %v141
    %v221 = vunpack.c.l.b16 %v142
    %v222 = vunpack.c.h.b16 %v142
    %v223 = vunpack.c.l.b16 %v143
    %v224 = vunpack.c.h.b16 %v143
    %v225 = vunpack.c.l.b16 %v144
    %v226 = vunpack.c.h.b16 %v144
    %v227 = vunpack.c.l.b16 %v145
    %v228 = vunpack.c.h.b16 %v145
    %v229 = vunpack.c.l.b16 %v146
    %v230 = vunpack.c.h.b16 %v146
    %v231 = vunpack.c.l.b16 %v147
    %v232 = vunpack.c.h.b16 %v147
    %v233 = vunpack.c.l.b16 %v148
    %v234 = vunpack.c.h.b16 %v148
    %v235 = vunpack.c.l.b16 %v149
    %v236 = vunpack.c.h.b16 %v149
    %v237 = vunpack.c.l.b16 %v150
    %v238 = vunpack.c.h.b16 %v150
    %v239 = vunpack.c.l.b16 %v151
    %v240 = vunpack.c.h.b16 %v151
    %v241 = vunpack.c.l.b16 %v152
    %v242 = vunpack.c.h.b16 %v152
    %v243 = vunpack.c.l.b16 %v153
    %v244 = vunpack.c.h.b16 %v153
    %v245 = vunpack.c.l.b16 %v154
    %v246 = vunpack.c.h.b16 %v154
    %v247 = vunpack.c.l.b16 %v155
    %v248 = vunpack.c.h.b16 %v155
    %v249 = vunpack.c.l.b16 %v156
    %v250 = vunpack.c.h.b16 %v156
    %v251 = vunpack.c.l.b16 %v157
    %v252 = vunpack.c.h.b16 %v157
    %v253 = vunpack.c.l.b16 %v158
    %v254 = vunpack.c.h.b16 %v158
    %v255 = vunpack.c.l.b16 %v159
    %v256 = vunpack.c.h.b16 %v159
    %v257 = vunpack.c.l.b16 %v160
    %v258 = vunpack.c.h.b16 %v160
    %v259 = vunpack.c.l.b16 %v161
    %v260 = vunpack.c.h.b16 %v161
    %v261 = vunpack.c.l.b16 %v162
    %v262 = vunpack.c.h.b16 %v162
    %v263 = vunpack.c.l.b16 %v163
    %v264 = vunpack.c.h.b16 %v163
    %v265 = vunpack.c.l.b16 %v164
    %v266 = vunpack.c.h.b16 %v164
    %v267 = vunpack.c.l.b16 %v165
    %v268 = vunpack.c.h.b16 %v165
    %v269 = vunpack.c.l.b16 %v166
    %v270 = vunpack.c.h.b16 %v166
    %v271 = vunpack.c.l.b16 %v167
    %v272 = vunpack.c.h.b16 %v167
    %v273 = vunpack.c.l.b16 %v168
    %v274 = vunpack.c.h.b16 %v168
    %v275 = vunpack.c.l.b16 %v169
    %v276 = vunpack.c.h.b16 %v169
    %v277 = vunpack.c.l.b16 %v170
    %v278 = vunpack.c.h.b16 %v170
    %v279 = vpack.c.b16 %v217, %v215
    %v280 = vpack.c.b16 %v218, %v216
    %v281 = vpack.c.b16 %v221, %v219
    %v282 = vpack.c.b16 %v222, %v220
    %v283 = vpack.c.b16 %v225, %v223
    %v284 = vpack.c.b16 %v226, %v224
    %v285 = vpack.c.b16 %v229, %v227
    %v286 = vpack.c.b16 %v230, %v228
    %v287 = vpack.c.b16 %v233, %v231
    %v288 = vpack.c.b16 %v234, %v232
    %v289 = vpack.c.b16 %v237, %v235
    %v290 = vpack.c.b16 %v238, %v236
    %v291 = vpack.c.b16 %v241, %v239
    %v292 = vpack.c.b16 %v242, %v240
    %v293 = vpack.c.b16 %v245, %v243
    %v294 = vpack.c.b16 %v246, %v244
    %v295 = vpack.c.b16 %v249, %v247
    %v296 = vpack.c.b16 %v250, %v248
    %v297 = vpack.c.b16 %v253, %v251
    %v298 = vpack.c.b16 %v254, %v252
    %v299 = vpack.c.b16 %v257, %v255
    %v300 = vpack.c.b16 %v258, %v256
    %v301 = vpack.c.b16 %v261, %v259
    %v302 = vpack.c.b16 %v262, %v260
    %v303 = vpack.c.b16 %v265, %v263
    %v304 = vpack.c.b16 %v266, %v264
    %v305 = vpack.c.b16 %v269, %v267
    %v306 = vpack.c.b16 %v270, %v268
    %v307 = vpack.c.b16 %v273, %v271
    %v308 = vpack.c.b16 %v274, %v272
    %v309 = vpack.c.b16 %v277, %v275
    %v310 = vpack.c.b16 %v278, %v276
    %343 = vmatprep.subr.bf16.mxu0 %v280
    %344 = vmatpush1.bf16.msra.mxu0 %v279
    %345 = vmatprep.subr.bf16.mxu0 %v282
    %346 = vmatpush1.bf16.msra.mxu0 %v281
    %347 = vmatprep.subr.bf16.mxu0 %v284
    %348 = vmatpush1.bf16.msra.mxu0 %v283
    %349 = vmatprep.subr.bf16.mxu0 %v286
    %350 = vmatpush1.bf16.msra.mxu0 %v285
    %351 = vmatprep.subr.bf16.mxu0 %v288
    %352 = vmatpush1.bf16.msra.mxu0 %v287
    %353 = vmatprep.subr.bf16.mxu0 %v290
    %354 = vmatpush1.bf16.msra.mxu0 %v289
    %355 = vmatprep.subr.bf16.mxu0 %v292
    %356 = vmatpush1.bf16.msra.mxu0 %v291
    %357 = vmatprep.subr.bf16.mxu0 %v294
    %358 = vmatpush1.bf16.msra.mxu0 %v293
    %359 = vmatprep.subr.bf16.mxu0 %v296
    %360 = vmatpush1.bf16.msra.mxu0 %v295
    %361 = vmatprep.subr.bf16.mxu0 %v298
    %362 = vmatpush1.bf16.msra.mxu0 %v297
    %363 = vmatprep.subr.bf16.mxu0 %v300
    %364 = vmatpush1.bf16.msra.mxu0 %v299
    %365 = vmatprep.subr.bf16.mxu0 %v302
    %366 = vmatpush1.bf16.msra.mxu0 %v301
    %367 = vmatprep.subr.bf16.mxu0 %v304
    %368 = vmatpush1.bf16.msra.mxu0 %v303
    %369 = vmatprep.subr.bf16.mxu0 %v306
    %370 = vmatpush1.bf16.msra.mxu0 %v305
    %371 = vmatprep.subr.bf16.mxu0 %v308
    %372 = vmatpush1.bf16.msra.mxu0 %v307
    %373 = vmatprep.subr.bf16.mxu0 %v310
    %374 = vmatpush1.bf16.msra.mxu0 %v309
    %375 = vmatprep.mubr.bf16.mxu0 %v138
    %376 = vmatmul.mubr.bf16.gmra.mrb[0].mxu0 %v137
    %v377 = vpop.f32.mrb[0].mxu0
    %v378 = vadd.f32 %v176, %v377
    %v379 = vpop.f32.mrb[0].mxu0
    %v380 = vadd.f32 %v180, %v379
    %v381 = vpop.f32.mrb[0].mxu0
    %v382 = vadd.f32 %v176, %v381
    %v383 = vpop.f32.mrb[0].mxu0
    %v384 = vadd.f32 %v180, %v383
    %385 = vdwg.mxu0
    %v386 = vadd.f32 %v49, %v378
    %v387 = vadd.f32 %v50, %v380
    %v388 = vadd.f32 %v51, %v382
    %v389 = vadd.f32 %v52, %v384
    %390 = vst [vmem:[#allocation7] sm:$0xff] %v386
    %391 = vst [vmem:[#allocation7 + $0x8] sm:$0xff] %v387
    %392 = vst [vmem:[#allocation7 + $0x10] sm:$0xff] %v388
    %393 = vst [vmem:[#allocation7 + $0x18] sm:$0xff] %v389
    // Predicated region
    $region30: #{tpu_custom_call.1} parent=1 // pred_check
      _
    $region31: #{tpu_custom_call.1} parent=1 // pred_check_branch
      %395 = sbr.rel (0) target = $region33
    $region32: #{tpu_custom_call.1} parent=1 // pred_region
      %s397 = ssub.s32 512, 512
      %398 = vsyncadd [#allocation4], %s397
      %s399 = sshll.u32 [#allocation7], 4
      %s400 = int_to_ptr.vmem [resolvable:$true] %s399
      %405 = dma.vmem_to_hbm [thread:$0]  %s400, 512, %s5, [#allocation4], 256, 256, 16
    $region33: #{tpu_custom_call.1} parent=1 // pred_fallthru
      _
    // Predicated region
    $region34: #{tpu_custom_call.1} parent=1 // pred_check
      _
    $region35: #{tpu_custom_call.1} parent=1 // pred_check_branch
      %407 = sbr.rel (0) target = $region37
    $region36: #{tpu_custom_call.1} parent=1 // pred_region
      %408 = dma.done [#allocation4], 512
    $region37: #{tpu_custom_call.1} parent=1 // pred_fallthru
      _
    %409 = vsyncpa [#allocation3], 1
    %410 = vsyncpa [#allocation6], 1
    %411 = vsyncpa [#allocation4], 1

</llo_original>
